<compile_context>
chip_gen: v5e
topology: v5e:2x2
jax: 0.10.0
libtpu: 0.0.40
codegen_flags: <defaults>
</compile_context>

<pallas_src>
import functools

import numpy as np
import jax
import jax.numpy as jnp
from jax.experimental import pallas as pl
from jax.experimental.pallas import tpu as pltpu


# ----------------------------------------------------------------------------
# small host-side helpers
# ----------------------------------------------------------------------------
def _round_up(x, m):
    return ((x + m - 1) // m) * m


def _cdiv(a, b):
    return -(-a // b)


def _vmem_capacity_bytes():
    """Trace-time VMEM capacity query (v5e/v6e: 128 MiB, v7x: 64 MiB)."""
    try:
        cap = getattr(pltpu.get_tpu_info(), "vmem_capacity_bytes", None)
        if cap:
            return int(cap)
    except Exception:
        pass
    return 64 * 1024 * 1024          # conservative default (v7x)


# ----------------------------------------------------------------------------
# Pallas kernel A: tiled matmul + bias (all convolutions via im2col)
# ----------------------------------------------------------------------------
def _matmul_bias_1k_kernel(a_ref, b_ref, bias_ref, o_ref):
    # single K step: no accumulator scratch, dot + bias straight to the output
    o_ref[...] = (jnp.dot(a_ref[...], b_ref[...],
                          preferred_element_type=jnp.float32) + bias_ref[...])


def _matmul_bias_acc_kernel(a_ref, b_ref, bias_ref, o_ref, acc_ref):
    @pl.when(pl.program_id(2) == 0)
    def _():
        acc_ref[...] = jnp.zeros_like(acc_ref)

    acc_ref[...] += jnp.dot(a_ref[...], b_ref[...],
                            preferred_element_type=jnp.float32)

    @pl.when(pl.program_id(2) == pl.num_programs(2) - 1)
    def _():
        o_ref[...] = acc_ref[...] + bias_ref[...]


def matmul_bias(a, b, bias, *, tk_cap=2048):
    """a:(M,K) @ b:(K,N) + bias:(N,) -> (M,N) f32 (bf16 operands on the MXU).

    M/N are padded to tile multiples (512/256, shrunk for tiny problems) so
    every store is lane-dense; K is kept un-padded when it fits in one step.
    """
    M, K = a.shape
    Kb, N = b.shape
    assert K == Kb
    tm = min(512, _round_up(M, 128))
    tn = min(256, _round_up(N, 128))
    Mp, Np = _round_up(M, tm), _round_up(N, tn)

    if a.dtype != jnp.bfloat16:
        a = a.astype(jnp.bfloat16)
    if b.dtype != jnp.bfloat16:
        b = b.astype(jnp.bfloat16)

    if K <= tk_cap:
        tk, Kp = K, K                                   # one K step, no K pad
    else:
        nk0 = _cdiv(K, tk_cap)
        tk = _round_up(_cdiv(K, nk0), 128)              # minimal K padding
        Kp = _round_up(K, tk)

    if (Mp, Kp) != (M, K):
        a = jnp.pad(a, ((0, Mp - M), (0, Kp - K)))
    if (Kp, Np) != (K, N):
        b = jnp.pad(b, ((0, Kp - K), (0, Np - N)))
    bias2 = jnp.pad(bias, ((0, Np - N),)) if Np != N else bias
    bias2 = bias2.reshape(1, Np).astype(jnp.float32)

    nk = Kp // tk
    if nk == 1:
        out = pl.pallas_call(
            _matmul_bias_1k_kernel,
            out_shape=jax.ShapeDtypeStruct((Mp, Np), jnp.float32),
            grid=(Mp // tm, Np // tn),
            in_specs=[
                pl.BlockSpec((tm, Kp), lambda i, j: (i, 0)),
                pl.BlockSpec((Kp, tn), lambda i, j: (0, j)),
                pl.BlockSpec((1, tn), lambda i, j: (0, j)),
            ],
            out_specs=pl.BlockSpec((tm, tn), lambda i, j: (i, j)),
            compiler_params=pltpu.CompilerParams(
                dimension_semantics=("parallel", "parallel")),
        )(a, b, bias2)
    else:
        out = pl.pallas_call(
            _matmul_bias_acc_kernel,
            out_shape=jax.ShapeDtypeStruct((Mp, Np), jnp.float32),
            grid=(Mp // tm, Np // tn, nk),
            in_specs=[
                pl.BlockSpec((tm, tk), lambda i, j, k: (i, k)),
                pl.BlockSpec((tk, tn), lambda i, j, k: (k, j)),
                pl.BlockSpec((1, tn), lambda i, j, k: (0, j)),
            ],
            out_specs=pl.BlockSpec((tm, tn), lambda i, j, k: (i, j)),
            scratch_shapes=[pltpu.VMEM((tm, tn), jnp.float32)],
            compiler_params=pltpu.CompilerParams(
                dimension_semantics=("parallel", "parallel", "arbitrary")),
        )(a, b, bias2)
    return out[:M, :N]


# ----------------------------------------------------------------------------
# Pallas kernel B: fused deformable sampling + tanh(color) + sigmoid(mod)
#                  + final ks-strided conv epilogue
# ----------------------------------------------------------------------------
def _deform_conv_kernel(base_ref, off_ref, x_ref, w_ref, *rest,
                        Hp, Wp, Wpr, N, C, has_coff, has_mod):
    # base_ref : (2N, T)        sampling grid (p_0 + p_n); rows [0:N]=x, [N:2N]=y
    # off_ref  : (2N, T)        learned offsets, same row layout
    # x_ref    : (C, Hp*Wpr)    zero-padded input image, flat (row stride Wpr), bf16
    # w_ref    : (outc, N*C)    final conv weight, column = n*C + ci, bf16
    # coff_ref : (N*C, T)       raw c_conv head (tanh applied here), optional
    # m_ref    : (N, T)         raw m_conv head (sigmoid applied here), optional
    # o_ref    : (outc, T)      final conv output tile
    # xall_ref : (N*C, T) bf16  VMEM scratch staging all sampled taps
    i = 0
    coff_ref = m_ref = None
    if has_coff:
        coff_ref = rest[i]; i += 1
    if has_mod:
        m_ref = rest[i]; i += 1
    o_ref, xall_ref = rest[i], rest[i + 1]

    rows_h = jax.lax.broadcasted_iota(jnp.int32, (Hp, 1), 0)
    rows_w = jax.lax.broadcasted_iota(jnp.int32, (Wpr, 1), 0)
    bx = jnp.float32(Hp - 1)
    by = jnp.float32(Wp - 1)

    @pl.loop(0, N)
    def _per_tap(n):
        # sampling coordinates for this kernel tap, (1, T)
        px = base_ref[pl.ds(n, 1), :] + off_ref[pl.ds(n, 1), :]
        py = base_ref[pl.ds(N + n, 1), :] + off_ref[pl.ds(N + n, 1), :]
        fx = jnp.floor(px)
        fy = jnp.floor(py)
        x0 = jnp.clip(fx, 0.0, bx)
        x1 = jnp.clip(fx + 1.0, 0.0, bx)
        y0 = jnp.clip(fy, 0.0, by)
        y1 = jnp.clip(fy + 1.0, 0.0, by)
        pcx = jnp.clip(px, 0.0, bx)
        pcy = jnp.clip(py, 0.0, by)
        wx0 = 1.0 + (x0 - pcx)
        wx1 = 1.0 - (x1 - pcx)
        wy0 = 1.0 + (y0 - pcy)
        wy1 = 1.0 - (y1 - pcy)

        x0i, x1i = x0.astype(jnp.int32), x1.astype(jnp.int32)
        y0i, y1i = y0.astype(jnp.int32), y1.astype(jnp.int32)

        # separable one-hot weight planes (small: (Hp, T) and (Wpr, T))
        a_hot = (jnp.where(rows_h == x0i, wx0, 0.0) +
                 jnp.where(rows_h == x1i, wx1, 0.0)).astype(jnp.bfloat16)
        b_hot = (jnp.where(rows_w == y0i, wy0, 0.0) +
                 jnp.where(rows_w == y1i, wy1, 0.0)).astype(jnp.bfloat16)

        # full gather matrix with ONE bf16 broadcast multiply; reshape is a
        # free view because Wpr is a multiple of 16 (bf16 sublane tile).
        g = (a_hot[:, None, :] * b_hot[None, :, :]).reshape(Hp * Wpr,
                                                            a_hot.shape[-1])

        # gather-as-matmul on the MXU: (C, Hp*Wpr) @ (Hp*Wpr, T) -> (C, T) f32
        xg = jnp.dot(x_ref[...], g, preferred_element_type=jnp.float32)
        if has_coff:
            xg = xg + jnp.tanh(coff_ref[pl.ds(n * C, C), :])
        if has_mod:
            xg = xg * jax.nn.sigmoid(m_ref[pl.ds(n, 1), :])
        xall_ref[pl.ds(n * C, C), :] = xg.astype(jnp.bfloat16)

    # fused final conv epilogue: (outc, N*C) @ (N*C, T)
    o_ref[...] = jnp.dot(w_ref[...], xall_ref[...],
                         preferred_element_type=jnp.float32)


def _deform_vmem_estimate(T, Kflat, Hp, Wpr, C, outc, N, has_coff, has_mod):
    bf16, f32 = 2, 4
    temps = Kflat * T * bf16                       # G plane (bf16)
    temps += 10 * (Hp + Wpr) * T * f32             # A/B one-hots + coord temps
    temps += 4 * C * T * f32                       # xg + slack
    io = 2 * (2 * N * T * f32) * 2                 # base + off, double buffered
    io += 2 * (C * Kflat * bf16)                   # x image block
    io += 2 * (outc * N * C * bf16)                # conv weight block
    io += 2 * (outc * T * f32)                     # output block
    if has_coff:
        io += 2 * (N * C * T * f32)
    if has_mod:
        io += 2 * (N * T * f32)
    scratch = N * C * T * bf16
    return temps + io + scratch


def deform_conv_fused(base, off, x_img, wconv, coff, mod, *,
                      Hp, Wp, Wpr, N, outc):
    """Fused deformable sampling + color offset + modulation + final conv.

    base:(2N,HW) f32, off:(b,2N,HW) f32, x_img:(b,c,Hp*Wpr) bf16,
    wconv:(outc,N*c) bf16, coff:(b,N*c,HW)|None f32, mod:(b,N,HW)|None f32.
    Returns (b, outc, HW) f32.
    """
    b = off.shape[0]
    HW = off.shape[2]
    C = x_img.shape[1]
    Kflat = x_img.shape[2]
    has_coff = coff is not None
    has_mod = mod is not None

    cap = _vmem_capacity_bytes()
    est = functools.partial(_deform_vmem_estimate, Kflat=Kflat, Hp=Hp, Wpr=Wpr,
                            C=C, outc=outc, N=N, has_coff=has_coff,
                            has_mod=has_mod)
    target = min(int(cap * 0.45), 56 << 20)
    HW128 = _round_up(HW, 128)
    T = min(2048, HW128)
    while T > 128 and int(1.5 * est(T)) > target:
        T -= 128
    # rebalance so the padded HW splits into near-equal tiles (minimal waste)
    n_tiles = _cdiv(HW128, T)
    T = _round_up(_cdiv(HW128, n_tiles), 128)
    HWp = n_tiles * T

    padw = HWp - HW
    if padw:
        base = jnp.pad(base, ((0, 0), (0, padw)))
        off = jnp.pad(off, ((0, 0), (0, 0), (0, padw)))
        if has_coff:
            coff = jnp.pad(coff, ((0, 0), (0, 0), (0, padw)))
        if has_mod:
            mod = jnp.pad(mod, ((0, 0), (0, 0), (0, padw)))

    kern = functools.partial(_deform_conv_kernel, Hp=Hp, Wp=Wp, Wpr=Wpr,
                             N=N, C=C, has_coff=has_coff, has_mod=has_mod)
    in_specs = [
        pl.BlockSpec((2 * N, T), lambda i, j: (0, j)),
        pl.BlockSpec((None, 2 * N, T), lambda i, j: (i, 0, j)),
        pl.BlockSpec((None, C, Kflat), lambda i, j: (i, 0, 0)),
        pl.BlockSpec((outc, N * C), lambda i, j: (0, 0)),
    ]
    args = [base, off, x_img, wconv]
    if has_coff:
        in_specs.append(pl.BlockSpec((None, N * C, T), lambda i, j: (i, 0, j)))
        args.append(coff)
    if has_mod:
        in_specs.append(pl.BlockSpec((None, N, T), lambda i, j: (i, 0, j)))
        args.append(mod)

    vmem_limit = int(min(int(cap * 0.85), max(2 * est(T), 32 << 20)))
    out = pl.pallas_call(
        kern,
        out_shape=jax.ShapeDtypeStruct((b, outc, HWp), jnp.float32),
        grid=(b, n_tiles),
        in_specs=in_specs,
        out_specs=pl.BlockSpec((None, outc, T), lambda i, j: (i, 0, j)),
        scratch_shapes=[pltpu.VMEM((N * C, T), jnp.bfloat16)],
        compiler_params=pltpu.CompilerParams(
            dimension_semantics=("parallel", "parallel"),
            vmem_limit_bytes=vmem_limit),
    )(*args)
    return out[:, :, :HW]


# ----------------------------------------------------------------------------
# JAX glue
# ----------------------------------------------------------------------------
def im2col(x, ks, pad, stride):
    """x: (B,C,H,W) -> (B*Ho*Wo, C*ks*ks) bf16 with (c, ki, kj) column order."""
    b, c, h, w = x.shape
    xp = jnp.pad(x, ((0, 0), (0, 0), (pad, pad), (pad, pad))).astype(jnp.bfloat16)
    Ho = (h + 2 * pad - ks) // stride + 1
    Wo = (w + 2 * pad - ks) // stride + 1
    pats = []
    for ki in range(ks):
        for kj in range(ks):
            pats.append(xp[:, :, ki:ki + stride * Ho:stride,
                           kj:kj + stride * Wo:stride])
    pats = jnp.stack(pats, axis=2)                    # (b, c, ks*ks, Ho, Wo)
    pats = pats.transpose(0, 3, 4, 1, 2)              # (b, Ho, Wo, c, ks*ks)
    return pats.reshape(b * Ho * Wo, c * ks * ks), Ho, Wo


def _make_base_grid(ho, wo, ks, stride, N):
    """p_0 + p_n, shaped (2N, ho*wo): rows [0:N] x (row) coords, [N:2N] y."""
    rng = np.arange(-(ks - 1) // 2, (ks - 1) // 2 + 1)
    p_n_x = np.repeat(rng, ks).astype(np.float32)     # tap -> dx (row)
    p_n_y = np.tile(rng, ks).astype(np.float32)       # tap -> dy (col)
    ii, jj = np.meshgrid(np.arange(ho), np.arange(wo), indexing="ij")
    p0_x = (1 + ii * stride).reshape(-1).astype(np.float32)   # (HW,)
    p0_y = (1 + jj * stride).reshape(-1).astype(np.float32)
    base_x = p_n_x[:, None] + p0_x[None, :]                   # (N, HW)
    base_y = p_n_y[:, None] + p0_y[None, :]
    return jnp.asarray(np.concatenate([base_x, base_y], axis=0),
                       dtype=jnp.float32)                     # (2N, HW)


def color_deform_conv2d(params, x, ref, *, ks=3, padding=1, stride=1,
                        modulation=False, color_deform=True):
    assert x.shape == ref.shape
    b, c, h, w = x.shape
    N = ks * ks
    outc = params["conv_w"].shape[0]

    # channel_down (1x1 conv, bias)
    fused = jnp.concatenate([x, ref], axis=1)                      # (b, 2c, h, w)
    a = fused.transpose(0, 2, 3, 1).reshape(b * h * w, 2 * c).astype(jnp.bfloat16)
    wd = params["cd_w"].reshape(c, 2 * c).T
    fused_flat = matmul_bias(a, wd, params["cd_b"])                # (b*h*w, c) f32
    fused_nchw = fused_flat.reshape(b, h, w, c).transpose(0, 3, 1, 2)

    # p_conv / c_conv / m_conv share the same im2col LHS -> ONE fused matmul
    cols, ho, wo = im2col(fused_nchw, ks=3, pad=1, stride=stride)
    HW = ho * wo

    w_parts = [params["p_w"].reshape(2 * N, c * 9).T]              # (c*9, 2N)
    b_parts = [params["p_b"]]
    if color_deform:
        w_parts.append(params["c_w"].reshape(N * c, c * 9).T)      # (c*9, N*c)
        b_parts.append(params["c_b"])
    if modulation:
        w_parts.append(params["m_w"].reshape(N, c * 9).T)          # (c*9, N)
        b_parts.append(params["m_b"])
    head = matmul_bias(cols, jnp.concatenate(w_parts, axis=1),
                       jnp.concatenate(b_parts, axis=0))           # (b*HW, ...)

    # offsets -> (b, 2N, HW): rows [0:N] x-offset per tap, [N:2N] y-offset
    off = head[:, :2 * N].reshape(b, HW, 2 * N).transpose(0, 2, 1)

    col0 = 2 * N
    coff = None
    if color_deform:
        coff = head[:, col0:col0 + N * c].reshape(b, HW, c, N)     # col = ci*N+n
        coff = coff.transpose(0, 3, 2, 1).reshape(b, N * c, HW)    # row = n*c+ci
        col0 += N * c
    mod = None
    if modulation:
        mod = head[:, col0:col0 + N].reshape(b, HW, N).transpose(0, 2, 1)

    # zero-padded input image; width padded to a multiple of 16 so the
    # in-kernel (Hp, Wpr, T) -> (Hp*Wpr, T) bf16 reshape is a free view.
    Hp, Wp = h + 2 * padding, w + 2 * padding
    Wpr = _round_up(Wp, 16)
    xp = jnp.pad(x, ((0, 0), (0, 0), (padding, padding), (padding, padding)))
    xp = jnp.pad(xp, ((0, 0), (0, 0), (0, 0), (0, Wpr - Wp)))
    x_img = xp.reshape(b, c, Hp * Wpr).astype(jnp.bfloat16)

    base = _make_base_grid(ho, wo, ks, stride, N)                  # (2N, HW)

    # final conv weight (no bias in the module), column order = n*c + ci
    wconv = params["conv_w"].reshape(outc, c, N).transpose(0, 2, 1)
    wconv = wconv.reshape(outc, N * c).astype(jnp.bfloat16)

    out = deform_conv_fused(base, off, x_img, wconv, coff, mod,
                            Hp=Hp, Wp=Wp, Wpr=Wpr, N=N, outc=outc)  # (b,outc,HW)
    return out.reshape(b, outc, ho, wo)                             # NCHW


# ----------------------------------------------------------------------------
# deterministic parameter init (matches PyTorch module shapes; synthetic values)
# ----------------------------------------------------------------------------
def init_params(key, inc, outc, ks=3, modulation=False, color_deform=True):
    N = ks * ks
    keys = jax.random.split(key, 10)

    def rnd(k, shape, scale):
        return jax.random.normal(k, shape, jnp.float32) * scale

    p = {
        "cd_w": rnd(keys[0], (inc, 2 * inc, 1, 1), 0.3),
        "cd_b": rnd(keys[1], (inc,), 0.1),
        "p_w": rnd(keys[2], (2 * N, inc, ks, ks), 0.05),
        "p_b": rnd(keys[3], (2 * N,), 0.05),
        "conv_w": rnd(keys[4], (outc, inc, ks, ks), 0.2),
    }
    if color_deform:
        p["c_w"] = rnd(keys[5], (N * inc, inc, ks, ks), 0.1)
        p["c_b"] = rnd(keys[6], (N * inc,), 0.1)
    if modulation:
        p["m_w"] = rnd(keys[7], (N, inc, ks, ks), 0.1)
        p["m_b"] = rnd(keys[8], (N,), 0.1)
    return p


if __name__ == "__main__":
    key = jax.random.PRNGKey(0)
    kx, kr, kp = jax.random.split(key, 3)

    b, inc, outc, h, w = 2, 4, 8, 16, 16
    x = jax.random.normal(kx, (b, inc, h, w), jnp.float32)
    ref = jax.random.normal(kr, (b, inc, h, w), jnp.float32)

    params = init_params(kp, inc, outc, ks=3, modulation=False, color_deform=True)

    out = color_deform_conv2d(params, x, ref, ks=3, padding=1, stride=1,
                              modulation=False, color_deform=True)
    out = jax.block_until_ready(out)

    assert out.shape == (b, outc, h, w), out.shape
    assert bool(jnp.all(jnp.isfinite(out)))
    print("KERNEL_OK")
</pallas_src>

<mosaic_0001>
module attributes {stable_mosaic.version = 11 : i64} {
  func.func @_matmul_bias_1k_kernel(%arg0: i32, %arg1: i32, %arg2: memref<512x8xbf16, #tpu.memory_space<vmem>>, %arg3: memref<8x128xbf16, #tpu.memory_space<vmem>>, %arg4: memref<1x128xf32, #tpu.memory_space<vmem>>, %arg5: memref<512x128xf32, #tpu.memory_space<vmem>>) attributes {dimension_semantics = [#tpu.dimension_semantics<parallel>, #tpu.dimension_semantics<parallel>], iteration_bounds = array<i64: 1, 1>, scalar_prefetch = 0 : i64, scratch_operands = 0 : i64, tpu.core_type = #tpu.core_type<tc>, window_params = [{transform_indices = @transform_0, window_bounds = array<i64: 512, 8>}, {transform_indices = @transform_1, window_bounds = array<i64: 8, 128>}, {transform_indices = @transform_2, window_bounds = array<i64: 1, 128>}, {transform_indices = @transform_3, window_bounds = array<i64: 512, 128>}]} {
    %c0 = arith.constant 0 : index
    %c0_0 = arith.constant 0 : index
    %0 = vector.load %arg2[%c0, %c0_0] : memref<512x8xbf16, #tpu.memory_space<vmem>>, vector<512x8xbf16>
    %c0_1 = arith.constant 0 : index
    %c0_2 = arith.constant 0 : index
    %1 = vector.load %arg3[%c0_1, %c0_2] : memref<8x128xbf16, #tpu.memory_space<vmem>>, vector<8x128xbf16>
    %cst = arith.constant dense<0.000000e+00> : vector<512x128xf32>
    %2 = tpu.matmul %0, %1, %cst {dimension_numbers = #tpu.dot_dimension_numbers<[1], [0], [0], [1], [0, 0, 1, 1], [], []>} : vector<512x8xbf16>, vector<8x128xbf16>, vector<512x128xf32> -> vector<512x128xf32>
    %c0_3 = arith.constant 0 : index
    %c0_4 = arith.constant 0 : index
    %3 = vector.load %arg4[%c0_3, %c0_4] : memref<1x128xf32, #tpu.memory_space<vmem>>, vector<1x128xf32>
    %4 = vector.broadcast %3 : vector<1x128xf32> to vector<512x128xf32>
    %5 = arith.addf %2, %4 : vector<512x128xf32>
    %c0_5 = arith.constant 0 : index
    %c0_6 = arith.constant 0 : index
    %6 = vector.load %arg5[%c0_5, %c0_6] : memref<512x128xf32, #tpu.memory_space<vmem>>, vector<512x128xf32>
    tpu.vector_store %arg5[%c0_5, %c0_6], %5 {strides = array<i32>} : memref<512x128xf32, #tpu.memory_space<vmem>>, vector<512x128xf32>,
    return
  }
  func.func @transform_0(%arg0: i32, %arg1: i32) -> (i32, i32) {
    %c0_i32 = arith.constant 0 : i32
    %c0_i32_0 = arith.constant 0 : i32
    return %arg0, %c0_i32 : i32, i32
  }
  func.func @transform_1(%arg0: i32, %arg1: i32) -> (i32, i32) {
    %c0_i32 = arith.constant 0 : i32
    %c0_i32_0 = arith.constant 0 : i32
    return %c0_i32, %arg1 : i32, i32
  }
  func.func @transform_2(%arg0: i32, %arg1: i32) -> (i32, i32) {
    %c0_i32 = arith.constant 0 : i32
    %c0_i32_0 = arith.constant 0 : i32
    return %c0_i32, %arg1 : i32, i32
  }
  func.func @transform_3(%arg0: i32, %arg1: i32) -> (i32, i32) {
    %c0_i32 = arith.constant 0 : i32
    return %arg0, %arg1 : i32, i32
  }
}

</mosaic_0001>

<llo_original>
// kernel: tpu_custom_call.1
$region0: #{tpu_custom_call.1}
  #allocation0 [shape = 'u32[]', space=smem, size = 0x4, offset = 0x4, fixed_abs, tag = 'smem constant byte address 0x4 - core index']
  #allocation1 [shape = 'u32[72,128]{1,0:T(1,128)}', space=vmem, size = 0x9000, scoped, tag = 'internal scratch']
  %s0 = inlined_call_operand.vmem [shape: bf16[512,8], index: 0, kind: input, shape index: {}]
  %s1 = inlined_call_operand.vmem [shape: bf16[8,128], index: 1, kind: input, shape index: {}]
  %s2 = inlined_call_operand.vmem [shape: f32[1,128], index: 2, kind: input, shape index: {}]
  %s3 = inlined_call_operand.hbm [shape: f32[512,128], index: 3, kind: output, shape index: {}]
  %s4 = sld [smem:[#allocation0]]
  $region22: #{tpu_custom_call.1} parent=0
    _
  %s6 = ssub.s32 1, %s4
  %s7 = scalar_select 0, %s6, %s4
  $region1: #{tpu_custom_call.1} parent=0
    #allocation2 [shape = 'u8[262144]{0}', space=vmem, size = 0x40000, scoped, tag = 'output window, operand 0, single buffered']
    #allocation3 [shape = 's32[1]{0}', space=sflag, size = 0x4, scoped, tag = 'scoped memory for tpu_custom_call.1']
    %8 = vsyncpa [#allocation3], 0
    // Predicated region
    $region2: #{tpu_custom_call.1} parent=1 // pred_check
      _
    $region3: #{tpu_custom_call.1} parent=1 // pred_check_branch
      %10 = sbr.rel (0) target = $region5
    $region4: #{tpu_custom_call.1} parent=1 // pred_region
      _
    $region5: #{tpu_custom_call.1} parent=1 // pred_fallthru
      _
    // Predicated region
    $region6: #{tpu_custom_call.1} parent=1 // pred_check
      _
    $region7: #{tpu_custom_call.1} parent=1 // pred_check_branch
      %12 = sbr.rel (0) target = $region9
    $region8: #{tpu_custom_call.1} parent=1 // pred_region
      _
    $region9: #{tpu_custom_call.1} parent=1 // pred_fallthru
      _
    // Predicated region
    $region10: #{tpu_custom_call.1} parent=1 // pred_check
      _
    $region11: #{tpu_custom_call.1} parent=1 // pred_check_branch
      %14 = sbr.rel (0) target = $region13
    $region12: #{tpu_custom_call.1} parent=1 // pred_region
      _
    $region13: #{tpu_custom_call.1} parent=1 // pred_fallthru
      _
    %v16 = vld [vmem:[%s0] sm:$0xf]
    %v17 = vld [vmem:[%s0 + $0x4] sm:$0xf]
    %v18 = vld [vmem:[%s0 + $0x8] sm:$0xf]
    %v19 = vld [vmem:[%s0 + $0xc] sm:$0xf]
    %v20 = vld [vmem:[%s0 + $0x10] sm:$0xf]
    %v21 = vld [vmem:[%s0 + $0x14] sm:$0xf]
    %v22 = vld [vmem:[%s0 + $0x18] sm:$0xf]
    %v23 = vld [vmem:[%s0 + $0x1c] sm:$0xf]
    %v24 = vld [vmem:[%s0 + $0x20] sm:$0xf]
    %v25 = vld [vmem:[%s0 + $0x24] sm:$0xf]
    %v26 = vld [vmem:[%s0 + $0x28] sm:$0xf]
    %v27 = vld [vmem:[%s0 + $0x2c] sm:$0xf]
    %v28 = vld [vmem:[%s0 + $0x30] sm:$0xf]
    %v29 = vld [vmem:[%s0 + $0x34] sm:$0xf]
    %v30 = vld [vmem:[%s0 + $0x38] sm:$0xf]
    %v31 = vld [vmem:[%s0 + $0x3c] sm:$0xf]
    %v32 = vld [vmem:[%s0 + $0x40] sm:$0xf]
    %v33 = vld [vmem:[%s0 + $0x44] sm:$0xf]
    %v34 = vld [vmem:[%s0 + $0x48] sm:$0xf]
    %v35 = vld [vmem:[%s0 + $0x4c] sm:$0xf]
    %v36 = vld [vmem:[%s0 + $0x50] sm:$0xf]
    %v37 = vld [vmem:[%s0 + $0x54] sm:$0xf]
    %v38 = vld [vmem:[%s0 + $0x58] sm:$0xf]
    %v39 = vld [vmem:[%s0 + $0x5c] sm:$0xf]
    %v40 = vld [vmem:[%s0 + $0x60] sm:$0xf]
    %v41 = vld [vmem:[%s0 + $0x64] sm:$0xf]
    %v42 = vld [vmem:[%s0 + $0x68] sm:$0xf]
    %v43 = vld [vmem:[%s0 + $0x6c] sm:$0xf]
    %v44 = vld [vmem:[%s0 + $0x70] sm:$0xf]
    %v45 = vld [vmem:[%s0 + $0x74] sm:$0xf]
    %v46 = vld [vmem:[%s0 + $0x78] sm:$0xf]
    %v47 = vld [vmem:[%s0 + $0x7c] sm:$0xf]
    %v48 = vld [vmem:[%s0 + $0x80] sm:$0xf]
    %v49 = vld [vmem:[%s0 + $0x84] sm:$0xf]
    %v50 = vld [vmem:[%s0 + $0x88] sm:$0xf]
    %v51 = vld [vmem:[%s0 + $0x8c] sm:$0xf]
    %v52 = vld [vmem:[%s0 + $0x90] sm:$0xf]
    %v53 = vld [vmem:[%s0 + $0x94] sm:$0xf]
    %v54 = vld [vmem:[%s0 + $0x98] sm:$0xf]
    %v55 = vld [vmem:[%s0 + $0x9c] sm:$0xf]
    %v56 = vld [vmem:[%s0 + $0xa0] sm:$0xf]
    %v57 = vld [vmem:[%s0 + $0xa4] sm:$0xf]
    %v58 = vld [vmem:[%s0 + $0xa8] sm:$0xf]
    %v59 = vld [vmem:[%s0 + $0xac] sm:$0xf]
    %v60 = vld [vmem:[%s0 + $0xb0] sm:$0xf]
    %v61 = vld [vmem:[%s0 + $0xb4] sm:$0xf]
    %v62 = vld [vmem:[%s0 + $0xb8] sm:$0xf]
    %v63 = vld [vmem:[%s0 + $0xbc] sm:$0xf]
    %v64 = vld [vmem:[%s0 + $0xc0] sm:$0xf]
    %v65 = vld [vmem:[%s0 + $0xc4] sm:$0xf]
    %v66 = vld [vmem:[%s0 + $0xc8] sm:$0xf]
    %v67 = vld [vmem:[%s0 + $0xcc] sm:$0xf]
    %v68 = vld [vmem:[%s0 + $0xd0] sm:$0xf]
    %v69 = vld [vmem:[%s0 + $0xd4] sm:$0xf]
    %v70 = vld [vmem:[%s0 + $0xd8] sm:$0xf]
    %v71 = vld [vmem:[%s0 + $0xdc] sm:$0xf]
    %v72 = vld [vmem:[%s0 + $0xe0] sm:$0xf]
    %v73 = vld [vmem:[%s0 + $0xe4] sm:$0xf]
    %v74 = vld [vmem:[%s0 + $0xe8] sm:$0xf]
    %v75 = vld [vmem:[%s0 + $0xec] sm:$0xf]
    %v76 = vld [vmem:[%s0 + $0xf0] sm:$0xf]
    %v77 = vld [vmem:[%s0 + $0xf4] sm:$0xf]
    %v78 = vld [vmem:[%s0 + $0xf8] sm:$0xf]
    %v79 = vld [vmem:[%s0 + $0xfc] sm:$0xf]
    %v80 = vld [vmem:[%s1] sm:$0xf]
    %v81 = vld [vmem:[%s2] sm:$0x1]
    %v83 = vperm.slane %v81, 0
    %v149 = vunpack.c.l.b16 %v16
    %v150 = vunpack.c.l.b16 %v17
    %v151 = vunpack.c.l.b16 %v18
    %v152 = vunpack.c.l.b16 %v19
    %v153 = vunpack.c.l.b16 %v20
    %v154 = vunpack.c.l.b16 %v21
    %v155 = vunpack.c.l.b16 %v22
    %v156 = vunpack.c.l.b16 %v23
    %v157 = vunpack.c.l.b16 %v24
    %v158 = vunpack.c.l.b16 %v25
    %v159 = vunpack.c.l.b16 %v26
    %v160 = vunpack.c.l.b16 %v27
    %v161 = vunpack.c.l.b16 %v28
    %v162 = vunpack.c.l.b16 %v29
    %v163 = vunpack.c.l.b16 %v30
    %v164 = vunpack.c.l.b16 %v31
    %v165 = vunpack.c.l.b16 %v32
    %v166 = vunpack.c.l.b16 %v33
    %v167 = vunpack.c.l.b16 %v34
    %v168 = vunpack.c.l.b16 %v35
    %v169 = vunpack.c.l.b16 %v36
    %v170 = vunpack.c.l.b16 %v37
    %v171 = vunpack.c.l.b16 %v38
    %v172 = vunpack.c.l.b16 %v39
    %v173 = vunpack.c.l.b16 %v40
    %v174 = vunpack.c.l.b16 %v41
    %v175 = vunpack.c.l.b16 %v42
    %v176 = vunpack.c.l.b16 %v43
    %v177 = vunpack.c.l.b16 %v44
    %v178 = vunpack.c.l.b16 %v45
    %v179 = vunpack.c.l.b16 %v46
    %v180 = vunpack.c.l.b16 %v47
    %v181 = vunpack.c.l.b16 %v48
    %v182 = vunpack.c.l.b16 %v49
    %v183 = vunpack.c.l.b16 %v50
    %v184 = vunpack.c.l.b16 %v51
    %v185 = vunpack.c.l.b16 %v52
    %v186 = vunpack.c.l.b16 %v53
    %v187 = vunpack.c.l.b16 %v54
    %v188 = vunpack.c.l.b16 %v55
    %v189 = vunpack.c.l.b16 %v56
    %v190 = vunpack.c.l.b16 %v57
    %v191 = vunpack.c.l.b16 %v58
    %v192 = vunpack.c.l.b16 %v59
    %v193 = vunpack.c.l.b16 %v60
    %v194 = vunpack.c.l.b16 %v61
    %v195 = vunpack.c.l.b16 %v62
    %v196 = vunpack.c.l.b16 %v63
    %v197 = vunpack.c.l.b16 %v64
    %v198 = vunpack.c.l.b16 %v65
    %v199 = vunpack.c.l.b16 %v66
    %v200 = vunpack.c.l.b16 %v67
    %v201 = vunpack.c.l.b16 %v68
    %v202 = vunpack.c.l.b16 %v69
    %v203 = vunpack.c.l.b16 %v70
    %v204 = vunpack.c.l.b16 %v71
    %v205 = vunpack.c.l.b16 %v72
    %v206 = vunpack.c.l.b16 %v73
    %v207 = vunpack.c.l.b16 %v74
    %v208 = vunpack.c.l.b16 %v75
    %v209 = vunpack.c.l.b16 %v76
    %v210 = vunpack.c.l.b16 %v77
    %v211 = vunpack.c.l.b16 %v78
    %v212 = vunpack.c.l.b16 %v79
    %v213 = vpack.c.b16 %v150, %v149
    %v214 = vpack.c.b16 %v152, %v151
    %v215 = vpack.c.b16 %v154, %v153
    %v216 = vpack.c.b16 %v156, %v155
    %v217 = vpack.c.b16 %v158, %v157
    %v218 = vpack.c.b16 %v160, %v159
    %v219 = vpack.c.b16 %v162, %v161
    %v220 = vpack.c.b16 %v164, %v163
    %v221 = vpack.c.b16 %v166, %v165
    %v222 = vpack.c.b16 %v168, %v167
    %v223 = vpack.c.b16 %v170, %v169
    %v224 = vpack.c.b16 %v172, %v171
    %v225 = vpack.c.b16 %v174, %v173
    %v226 = vpack.c.b16 %v176, %v175
    %v227 = vpack.c.b16 %v178, %v177
    %v228 = vpack.c.b16 %v180, %v179
    %v229 = vpack.c.b16 %v182, %v181
    %v230 = vpack.c.b16 %v184, %v183
    %v231 = vpack.c.b16 %v186, %v185
    %v232 = vpack.c.b16 %v188, %v187
    %v233 = vpack.c.b16 %v190, %v189
    %v234 = vpack.c.b16 %v192, %v191
    %v235 = vpack.c.b16 %v194, %v193
    %v236 = vpack.c.b16 %v196, %v195
    %v237 = vpack.c.b16 %v198, %v197
    %v238 = vpack.c.b16 %v200, %v199
    %v239 = vpack.c.b16 %v202, %v201
    %v240 = vpack.c.b16 %v204, %v203
    %v241 = vpack.c.b16 %v206, %v205
    %v242 = vpack.c.b16 %v208, %v207
    %v243 = vpack.c.b16 %v210, %v209
    %v244 = vpack.c.b16 %v212, %v211
    %vm245 = vcmask 64512
    %v247 = vsel %vm245, %v213, 0
    %v250 = vsel %vm245, %v214, 0
    %v253 = vsel %vm245, %v215, 0
    %v256 = vsel %vm245, %v216, 0
    %v259 = vsel %vm245, %v217, 0
    %v262 = vsel %vm245, %v218, 0
    %v265 = vsel %vm245, %v219, 0
    %v268 = vsel %vm245, %v220, 0
    %v271 = vsel %vm245, %v221, 0
    %v274 = vsel %vm245, %v222, 0
    %v277 = vsel %vm245, %v223, 0
    %v280 = vsel %vm245, %v224, 0
    %v283 = vsel %vm245, %v225, 0
    %v286 = vsel %vm245, %v226, 0
    %v289 = vsel %vm245, %v227, 0
    %v292 = vsel %vm245, %v228, 0
    %v295 = vsel %vm245, %v229, 0
    %v298 = vsel %vm245, %v230, 0
    %v301 = vsel %vm245, %v231, 0
    %v304 = vsel %vm245, %v232, 0
    %v307 = vsel %vm245, %v233, 0
    %v310 = vsel %vm245, %v234, 0
    %v313 = vsel %vm245, %v235, 0
    %v316 = vsel %vm245, %v236, 0
    %v319 = vsel %vm245, %v237, 0
    %v322 = vsel %vm245, %v238, 0
    %v325 = vsel %vm245, %v239, 0
    %v328 = vsel %vm245, %v240, 0
    %v331 = vsel %vm245, %v241, 0
    %v334 = vsel %vm245, %v242, 0
    %v337 = vsel %vm245, %v243, 0
    %v340 = vsel %vm245, %v244, 0
    %vm342 = vcmask 1043456
    %v344 = vsel %vm342, %v80, 0
    %346 = vmatpush.bf16.msra.mxu0 0
    %347 = vmatpush.bf16.msra.mxu0 0
    %348 = vmatpush.bf16.msra.mxu0 0
    %349 = vmatpush.bf16.msra.mxu0 0
    %350 = vmatpush.bf16.msra.mxu0 0
    %351 = vmatpush.bf16.msra.mxu0 0
    %352 = vmatpush.bf16.msra.mxu0 0
    %353 = vmatpush.bf16.msra.mxu0 %v344
    %354 = vmatmul.bf16.gmra.mxu0 %v247
    %v355 = vpop.f32.mrf.mxu0
    %v356 = vadd.f32 %v83, %v355
    %v357 = vpop.f32.mrf.mxu0
    %v358 = vadd.f32 %v83, %v357
    %359 = vmatmul.bf16.gmra.mxu0 %v250
    %v360 = vpop.f32.mrf.mxu0
    %v361 = vadd.f32 %v83, %v360
    %v362 = vpop.f32.mrf.mxu0
    %v363 = vadd.f32 %v83, %v362
    %364 = vmatmul.bf16.gmra.mxu0 %v253
    %v365 = vpop.f32.mrf.mxu0
    %v366 = vadd.f32 %v83, %v365
    %v367 = vpop.f32.mrf.mxu0
    %v368 = vadd.f32 %v83, %v367
    %369 = vmatmul.bf16.gmra.mxu0 %v256
    %v370 = vpop.f32.mrf.mxu0
    %v371 = vadd.f32 %v83, %v370
    %v372 = vpop.f32.mrf.mxu0
    %v373 = vadd.f32 %v83, %v372
    %374 = vmatmul.bf16.gmra.mxu0 %v259
    %v375 = vpop.f32.mrf.mxu0
    %v376 = vadd.f32 %v83, %v375
    %v377 = vpop.f32.mrf.mxu0
    %v378 = vadd.f32 %v83, %v377
    %379 = vmatmul.bf16.gmra.mxu0 %v262
    %v380 = vpop.f32.mrf.mxu0
    %v381 = vadd.f32 %v83, %v380
    %v382 = vpop.f32.mrf.mxu0
    %v383 = vadd.f32 %v83, %v382
    %384 = vmatmul.bf16.gmra.mxu0 %v265
    %v385 = vpop.f32.mrf.mxu0
    %v386 = vadd.f32 %v83, %v385
    %v387 = vpop.f32.mrf.mxu0
    %v388 = vadd.f32 %v83, %v387
    %389 = vmatmul.bf16.gmra.mxu0 %v268
    %v390 = vpop.f32.mrf.mxu0
    %v391 = vadd.f32 %v83, %v390
    %v392 = vpop.f32.mrf.mxu0
    %v393 = vadd.f32 %v83, %v392
    %394 = vmatmul.bf16.gmra.mxu0 %v271
    %v395 = vpop.f32.mrf.mxu0
    %v396 = vadd.f32 %v83, %v395
    %v397 = vpop.f32.mrf.mxu0
    %v398 = vadd.f32 %v83, %v397
    %399 = vmatmul.bf16.gmra.mxu0 %v274
    %v400 = vpop.f32.mrf.mxu0
    %v401 = vadd.f32 %v83, %v400
    %v402 = vpop.f32.mrf.mxu0
    %v403 = vadd.f32 %v83, %v402
    %404 = vmatmul.bf16.gmra.mxu0 %v277
    %v405 = vpop.f32.mrf.mxu0
    %v406 = vadd.f32 %v83, %v405
    %v407 = vpop.f32.mrf.mxu0
    %v408 = vadd.f32 %v83, %v407
    %409 = vmatmul.bf16.gmra.mxu0 %v280
    %v410 = vpop.f32.mrf.mxu0
    %v411 = vadd.f32 %v83, %v410
    %v412 = vpop.f32.mrf.mxu0
    %v413 = vadd.f32 %v83, %v412
    %414 = vmatmul.bf16.gmra.mxu0 %v283
    %v415 = vpop.f32.mrf.mxu0
    %v416 = vadd.f32 %v83, %v415
    %v417 = vpop.f32.mrf.mxu0
    %v418 = vadd.f32 %v83, %v417
    %419 = vmatmul.bf16.gmra.mxu0 %v286
    %v420 = vpop.f32.mrf.mxu0
    %v421 = vadd.f32 %v83, %v420
    %v422 = vpop.f32.mrf.mxu0
    %v423 = vadd.f32 %v83, %v422
    %424 = vmatmul.bf16.gmra.mxu0 %v289
    %v425 = vpop.f32.mrf.mxu0
    %v426 = vadd.f32 %v83, %v425
    %v427 = vpop.f32.mrf.mxu0
    %v428 = vadd.f32 %v83, %v427
    %429 = vmatmul.bf16.gmra.mxu0 %v292
    %v430 = vpop.f32.mrf.mxu0
    %v431 = vadd.f32 %v83, %v430
    %v432 = vpop.f32.mrf.mxu0
    %v433 = vadd.f32 %v83, %v432
    %434 = vmatmul.bf16.gmra.mxu0 %v295
    %v435 = vpop.f32.mrf.mxu0
    %v436 = vadd.f32 %v83, %v435
    %v437 = vpop.f32.mrf.mxu0
    %v438 = vadd.f32 %v83, %v437
    %439 = vmatmul.bf16.gmra.mxu0 %v298
    %v440 = vpop.f32.mrf.mxu0
    %v441 = vadd.f32 %v83, %v440
    %v442 = vpop.f32.mrf.mxu0
    %v443 = vadd.f32 %v83, %v442
    %444 = vmatmul.bf16.gmra.mxu0 %v301
    %v445 = vpop.f32.mrf.mxu0
    %v446 = vadd.f32 %v83, %v445
    %v447 = vpop.f32.mrf.mxu0
    %v448 = vadd.f32 %v83, %v447
    %449 = vmatmul.bf16.gmra.mxu0 %v304
    %v450 = vpop.f32.mrf.mxu0
    %v451 = vadd.f32 %v83, %v450
    %v452 = vpop.f32.mrf.mxu0
    %v453 = vadd.f32 %v83, %v452
    %454 = vmatmul.bf16.gmra.mxu0 %v307
    %v455 = vpop.f32.mrf.mxu0
    %v456 = vadd.f32 %v83, %v455
    %v457 = vpop.f32.mrf.mxu0
    %v458 = vadd.f32 %v83, %v457
    %459 = vmatmul.bf16.gmra.mxu0 %v310
    %v460 = vpop.f32.mrf.mxu0
    %v461 = vadd.f32 %v83, %v460
    %v462 = vpop.f32.mrf.mxu0
    %v463 = vadd.f32 %v83, %v462
    %464 = vmatmul.bf16.gmra.mxu0 %v313
    %v465 = vpop.f32.mrf.mxu0
    %v466 = vadd.f32 %v83, %v465
    %v467 = vpop.f32.mrf.mxu0
    %v468 = vadd.f32 %v83, %v467
    %469 = vmatmul.bf16.gmra.mxu0 %v316
    %v470 = vpop.f32.mrf.mxu0
    %v471 = vadd.f32 %v83, %v470
    %v472 = vpop.f32.mrf.mxu0
    %v473 = vadd.f32 %v83, %v472
    %474 = vmatmul.bf16.gmra.mxu0 %v319
    %v475 = vpop.f32.mrf.mxu0
    %v476 = vadd.f32 %v83, %v475
    %v477 = vpop.f32.mrf.mxu0
    %v478 = vadd.f32 %v83, %v477
    %479 = vmatmul.bf16.gmra.mxu0 %v322
    %v480 = vpop.f32.mrf.mxu0
    %v481 = vadd.f32 %v83, %v480
    %v482 = vpop.f32.mrf.mxu0
    %v483 = vadd.f32 %v83, %v482
    %484 = vmatmul.bf16.gmra.mxu0 %v325
    %v485 = vpop.f32.mrf.mxu0
    %v486 = vadd.f32 %v83, %v485
    %v487 = vpop.f32.mrf.mxu0
    %v488 = vadd.f32 %v83, %v487
    %489 = vmatmul.bf16.gmra.mxu0 %v328
    %v490 = vpop.f32.mrf.mxu0
    %v491 = vadd.f32 %v83, %v490
    %v492 = vpop.f32.mrf.mxu0
    %v493 = vadd.f32 %v83, %v492
    %494 = vmatmul.bf16.gmra.mxu0 %v331
    %v495 = vpop.f32.mrf.mxu0
    %v496 = vadd.f32 %v83, %v495
    %v497 = vpop.f32.mrf.mxu0
    %v498 = vadd.f32 %v83, %v497
    %499 = vmatmul.bf16.gmra.mxu0 %v334
    %v500 = vpop.f32.mrf.mxu0
    %v501 = vadd.f32 %v83, %v500
    %v502 = vpop.f32.mrf.mxu0
    %v503 = vadd.f32 %v83, %v502
    %504 = vmatmul.bf16.gmra.mxu0 %v337
    %v505 = vpop.f32.mrf.mxu0
    %v506 = vadd.f32 %v83, %v505
    %v507 = vpop.f32.mrf.mxu0
    %v508 = vadd.f32 %v83, %v507
    %509 = vmatmul.bf16.gmra.mxu0 %v340
    %v510 = vpop.f32.mrf.mxu0
    %v511 = vadd.f32 %v83, %v510
    %v512 = vpop.f32.mrf.mxu0
    %v513 = vadd.f32 %v83, %v512
    %514 = vdwg.mxu0
    %515 = vst [vmem:[#allocation2] sm:$0xff] %v356
    %516 = vst [vmem:[#allocation2 + $0x8] sm:$0xff] %v358
    %517 = vst [vmem:[#allocation2 + $0x10] sm:$0xff] %v361
    %518 = vst [vmem:[#allocation2 + $0x18] sm:$0xff] %v363
    %519 = vst [vmem:[#allocation2 + $0x20] sm:$0xff] %v366
    %520 = vst [vmem:[#allocation2 + $0x28] sm:$0xff] %v368
    %521 = vst [vmem:[#allocation2 + $0x30] sm:$0xff] %v371
    %522 = vst [vmem:[#allocation2 + $0x38] sm:$0xff] %v373
    %523 = vst [vmem:[#allocation2 + $0x40] sm:$0xff] %v376
    %524 = vst [vmem:[#allocation2 + $0x48] sm:$0xff] %v378
    %525 = vst [vmem:[#allocation2 + $0x50] sm:$0xff] %v381
    %526 = vst [vmem:[#allocation2 + $0x58] sm:$0xff] %v383
    %527 = vst [vmem:[#allocation2 + $0x60] sm:$0xff] %v386
    %528 = vst [vmem:[#allocation2 + $0x68] sm:$0xff] %v388
    %529 = vst [vmem:[#allocation2 + $0x70] sm:$0xff] %v391
    %530 = vst [vmem:[#allocation2 + $0x78] sm:$0xff] %v393
    %531 = vst [vmem:[#allocation2 + $0x80] sm:$0xff] %v396
    %532 = vst [vmem:[#allocation2 + $0x88] sm:$0xff] %v398
    %533 = vst [vmem:[#allocation2 + $0x90] sm:$0xff] %v401
    %534 = vst [vmem:[#allocation2 + $0x98] sm:$0xff] %v403
    %535 = vst [vmem:[#allocation2 + $0xa0] sm:$0xff] %v406
    %536 = vst [vmem:[#allocation2 + $0xa8] sm:$0xff] %v408
    %537 = vst [vmem:[#allocation2 + $0xb0] sm:$0xff] %v411
    %538 = vst [vmem:[#allocation2 + $0xb8] sm:$0xff] %v413
    %539 = vst [vmem:[#allocation2 + $0xc0] sm:$0xff] %v416
    %540 = vst [vmem:[#allocation2 + $0xc8] sm:$0xff] %v418
    %541 = vst [vmem:[#allocation2 + $0xd0] sm:$0xff] %v421
    %542 = vst [vmem:[#allocation2 + $0xd8] sm:$0xff] %v423
    %543 = vst [vmem:[#allocation2 + $0xe0] sm:$0xff] %v426
    %544 = vst [vmem:[#allocation2 + $0xe8] sm:$0xff] %v428
    %545 = vst [vmem:[#allocation2 + $0xf0] sm:$0xff] %v431
    %546 = vst [vmem:[#allocation2 + $0xf8] sm:$0xff] %v433
    %547 = vst [vmem:[#allocation2 + $0x100] sm:$0xff] %v436
    %548 = vst [vmem:[#allocation2 + $0x108] sm:$0xff] %v438
    %549 = vst [vmem:[#allocation2 + $0x110] sm:$0xff] %v441
    %550 = vst [vmem:[#allocation2 + $0x118] sm:$0xff] %v443
    %551 = vst [vmem:[#allocation2 + $0x120] sm:$0xff] %v446
    %552 = vst [vmem:[#allocation2 + $0x128] sm:$0xff] %v448
    %553 = vst [vmem:[#allocation2 + $0x130] sm:$0xff] %v451
    %554 = vst [vmem:[#allocation2 + $0x138] sm:$0xff] %v453
    %555 = vst [vmem:[#allocation2 + $0x140] sm:$0xff] %v456
    %556 = vst [vmem:[#allocation2 + $0x148] sm:$0xff] %v458
    %557 = vst [vmem:[#allocation2 + $0x150] sm:$0xff] %v461
    %558 = vst [vmem:[#allocation2 + $0x158] sm:$0xff] %v463
    %559 = vst [vmem:[#allocation2 + $0x160] sm:$0xff] %v466
    %560 = vst [vmem:[#allocation2 + $0x168] sm:$0xff] %v468
    %561 = vst [vmem:[#allocation2 + $0x170] sm:$0xff] %v471
    %562 = vst [vmem:[#allocation2 + $0x178] sm:$0xff] %v473
    %563 = vst [vmem:[#allocation2 + $0x180] sm:$0xff] %v476
    %564 = vst [vmem:[#allocation2 + $0x188] sm:$0xff] %v478
    %565 = vst [vmem:[#allocation2 + $0x190] sm:$0xff] %v481
    %566 = vst [vmem:[#allocation2 + $0x198] sm:$0xff] %v483
    %567 = vst [vmem:[#allocation2 + $0x1a0] sm:$0xff] %v486
    %568 = vst [vmem:[#allocation2 + $0x1a8] sm:$0xff] %v488
    %569 = vst [vmem:[#allocation2 + $0x1b0] sm:$0xff] %v491
    %570 = vst [vmem:[#allocation2 + $0x1b8] sm:$0xff] %v493
    %571 = vst [vmem:[#allocation2 + $0x1c0] sm:$0xff] %v496
    %572 = vst [vmem:[#allocation2 + $0x1c8] sm:$0xff] %v498
    %573 = vst [vmem:[#allocation2 + $0x1d0] sm:$0xff] %v501
    %574 = vst [vmem:[#allocation2 + $0x1d8] sm:$0xff] %v503
    %575 = vst [vmem:[#allocation2 + $0x1e0] sm:$0xff] %v506
    %576 = vst [vmem:[#allocation2 + $0x1e8] sm:$0xff] %v508
    %577 = vst [vmem:[#allocation2 + $0x1f0] sm:$0xff] %v511
    %578 = vst [vmem:[#allocation2 + $0x1f8] sm:$0xff] %v513
    // Predicated region
    $region14: #{tpu_custom_call.1} parent=1 // pred_check
      _
    $region15: #{tpu_custom_call.1} parent=1 // pred_check_branch
      %580 = sbr.rel (0) target = $region17
    $region16: #{tpu_custom_call.1} parent=1 // pred_region
      %582 = vsyncadd [#allocation3], 0
      %s583 = sshll.u32 [#allocation2], 4
      %s584 = int_to_ptr.vmem [resolvable:$true] %s583
      %s585 = sshll.u32 %s3, 4
      %s586 = int_to_ptr.hbm [resolvable:$true] %s585
      %591 = dma.vmem_to_hbm [thread:$0]  %s584, 8192, %s586, [#allocation3], 128, 128, 8
    $region17: #{tpu_custom_call.1} parent=1 // pred_fallthru
      _
    // Predicated region
    $region18: #{tpu_custom_call.1} parent=1 // pred_check
      _
    $region19: #{tpu_custom_call.1} parent=1 // pred_check_branch
      %593 = sbr.rel (0) target = $region21
    $region20: #{tpu_custom_call.1} parent=1 // pred_region
      %595 = dma.done [#allocation3], 8192
    $region21: #{tpu_custom_call.1} parent=1 // pred_fallthru
      _
    %596 = vsyncpa [#allocation3], 1

</llo_original>
